<compile_context>
chip_gen: v7x
topology: tpu7x:2x2x1
jax: 0.10.0
libtpu: 0.0.40
codegen_flags: <defaults>
</compile_context>

<pallas_src>
import math

import jax
import jax.numpy as jnp
from jax.experimental import pallas as pl
from jax.experimental.pallas import tpu as pltpu

LANES = 128
CHUNK_ROWS = 128      # rows processed per inner-loop iteration (16 vregs/interm.)
MAX_BLOCK_ROWS = 8192 # (8192,128) f32 = 4 MiB per input per pipeline buffer


def _dice_bce_kernel(x_ref, t_ref, out_ref):
    """Per-block partial sums, accumulated chunk-by-chunk in vregs.

    out_ref: f32[8, 4*LANES]; lane columns
      [0:128)   -> sum(p*t)   (intersection)
      [128:256) -> sum(p)
      [256:384) -> sum(t)
      [384:512) -> sum(bce)
    each stored as an (8,128) sublane/lane partial reduced by the wrapper.
    """
    block_rows = x_ref.shape[0]

    def chunk_sums(r0, rows):
        x = x_ref[pl.ds(r0, rows), :].astype(jnp.float32)   # logits
        t = t_ref[pl.ds(r0, rows), :].astype(jnp.float32)   # targets in [0,1]
        # Shared exp for sigmoid and stable logit-space BCE:
        #   e = exp(-|x|); sigmoid(x) = where(x>=0, 1, e) / (1+e)
        #   bce = max(x,0) - x*t + log(1+e)
        e = jnp.exp(-jnp.abs(x))
        lg = jnp.log(1.0 + e)                      # single EUP log (1+e in (1,2])
        inv = pl.reciprocal(1.0 + e, approx=True)  # EUP approx rcp; error << 1e-4
        p = jnp.where(x >= 0.0, inv, e * inv)
        bce = jnp.maximum(x, 0.0) - x * t + lg

        def fold8(v):
            # (rows,128) -> (8,128): layout-preserving reshape + pure VPU adds.
            return jnp.sum(v.reshape(rows // 8, 8, LANES), axis=0)

        return fold8(p * t), fold8(p), fold8(t), fold8(bce)

    zero = jnp.zeros((8, LANES), jnp.float32)
    acc = (zero, zero, zero, zero)

    chunk = min(CHUNK_ROWS, block_rows)
    n_chunks, rem = divmod(block_rows, chunk)

    if n_chunks == 1:
        acc = tuple(a + v for a, v in zip(acc, chunk_sums(0, chunk)))
    elif n_chunks > 1:
        def body(c, carry):
            r0 = pl.multiple_of(c * chunk, chunk)
            return tuple(a + v for a, v in zip(carry, chunk_sums(r0, chunk)))
        acc = jax.lax.fori_loop(0, n_chunks, body, acc)
    if rem:  # static remainder (block_rows is 8-aligned, so rem is too)
        acc = tuple(a + v for a, v in zip(acc, chunk_sums(n_chunks * chunk, rem)))

    out_ref[:, 0 * LANES:1 * LANES] = acc[0]
    out_ref[:, 1 * LANES:2 * LANES] = acc[1]
    out_ref[:, 2 * LANES:3 * LANES] = acc[2]
    out_ref[:, 3 * LANES:4 * LANES] = acc[3]


def _choose_blocking(n):
    """Pick (block_rows, num_blocks): 8-aligned rows, >=2 blocks when possible
    (grid axis is 'parallel' -> both v7x TensorCores), block <= MAX_BLOCK_ROWS."""
    rows8 = pl.cdiv(pl.cdiv(n, LANES), 8) * 8
    if rows8 <= 8:
        return 8, 1
    target_blocks = max(2, pl.cdiv(rows8, MAX_BLOCK_ROWS))
    block_rows = min(MAX_BLOCK_ROWS, pl.cdiv(rows8, target_blocks * 8) * 8)
    num_blocks = pl.cdiv(rows8, block_rows)
    return block_rows, num_blocks


def dice_bce_loss(x, target, smooth=1.0):
    n = x.size
    block_rows, num_blocks = _choose_blocking(n)
    padded_rows = num_blocks * block_rows
    padded_n = padded_rows * LANES
    pad_count = padded_n - n  # static Python int

    xf = jnp.ravel(x)
    tf = jnp.ravel(target)
    if pad_count:
        # Only ragged shapes pay this copy; padded sums are corrected analytically.
        # TODO(synk): for very large ragged tensors a masked last-block path
        # (pl.when on the final grid step) would avoid this extra HBM copy.
        xf = jnp.pad(xf, (0, pad_count))
        tf = jnp.pad(tf, (0, pad_count))
    x2 = xf.reshape(padded_rows, LANES)
    t2 = tf.reshape(padded_rows, LANES)

    block_bytes = block_rows * LANES * 4
    vmem_limit = min(max(4 * block_bytes + (2 << 20), 32 << 20), 64 << 20)

    partials = pl.pallas_call(
        _dice_bce_kernel,
        out_shape=jax.ShapeDtypeStruct((num_blocks * 8, 4 * LANES), jnp.float32),
        grid=(num_blocks,),
        in_specs=[
            pl.BlockSpec((block_rows, LANES), lambda i: (i, 0)),
            pl.BlockSpec((block_rows, LANES), lambda i: (i, 0)),
        ],
        out_specs=pl.BlockSpec((8, 4 * LANES), lambda i: (i, 0)),
        compiler_params=pltpu.CompilerParams(
            # Independent blocks (no carried accumulator) -> shardable across
            # TensorCores on multi-core chips.
            dimension_semantics=("parallel",),
            vmem_limit_bytes=vmem_limit,
        ),
    )(x2, t2)

    inter = jnp.sum(partials[:, 0 * LANES:1 * LANES])
    sum_p = jnp.sum(partials[:, 1 * LANES:2 * LANES])
    sum_t = jnp.sum(partials[:, 2 * LANES:3 * LANES])
    sum_bce = jnp.sum(partials[:, 3 * LANES:4 * LANES])

    if pad_count:
        # Pad elements are (x=0, t=0): p = 0.5, p*t = 0, t = 0, bce = ln 2.
        sum_p = sum_p - 0.5 * float(pad_count)
        sum_bce = sum_bce - math.log(2.0) * float(pad_count)

    dice_loss = 1.0 - (2.0 * inter + smooth) / (sum_p + sum_t + smooth)
    bce_mean = sum_bce / float(n)
    return bce_mean + dice_loss


def _reference_loss(x, target, smooth=1.0):
    p = jax.nn.sigmoid(x.astype(jnp.float32)).reshape(-1)
    t = target.astype(jnp.float32).reshape(-1)
    inter = jnp.sum(p * t)
    dice = 1.0 - (2.0 * inter + smooth) / (jnp.sum(p) + jnp.sum(t) + smooth)
    eps = 1e-12
    bce = -jnp.mean(t * jnp.log(p + eps) + (1.0 - t) * jnp.log(1.0 - p + eps))
    return bce + dice


if __name__ == "__main__":
    key = jax.random.PRNGKey(0)
    k1, k2 = jax.random.split(key)
    # NCHW logits and binary targets
    x = jax.random.normal(k1, (2, 4, 16, 16), dtype=jnp.float32)
    target = jax.random.bernoulli(k2, 0.5, (2, 4, 16, 16)).astype(jnp.float32)

    loss = dice_bce_loss(x, target, smooth=1.0)
    loss = jax.block_until_ready(loss)

    ref = _reference_loss(x, target, smooth=1.0)
    # Kernel uses the stable logit-space BCE and the EUP approximate reciprocal
    # (1+e in (1,2]); both contribute <~1e-4 absolute on a loss of O(1).
    assert jnp.allclose(loss, ref, atol=2e-4, rtol=2e-4), (loss, ref)

    print("KERNEL_OK")
</pallas_src>

<mosaic_0001>
module attributes {stable_mosaic.version = 11 : i64} {
  func.func @_dice_bce_kernel(%arg0: i32, %arg1: memref<8x128xf32, #tpu.memory_space<vmem>>, %arg2: memref<8x128xf32, #tpu.memory_space<vmem>>, %arg3: memref<8x512xf32, #tpu.memory_space<vmem>>) attributes {dimension_semantics = [#tpu.dimension_semantics<parallel>], iteration_bounds = array<i64: 2>, scalar_prefetch = 0 : i64, scratch_operands = 0 : i64, tpu.core_type = #tpu.core_type<tc>, window_params = [{transform_indices = @transform_0, window_bounds = array<i64: 8, 128>}, {transform_indices = @transform_1, window_bounds = array<i64: 8, 128>}, {transform_indices = @transform_2, window_bounds = array<i64: 8, 512>}]} {
    %cst = arith.constant 0.000000e+00 : f32
    %0 = vector.broadcast %cst : f32 to vector<8x128xf32>
    %c0 = arith.constant 0 : index
    %c0_0 = arith.constant 0 : index
    %1 = vector.load %arg1[%c0, %c0_0] : memref<8x128xf32, #tpu.memory_space<vmem>>, vector<8x128xf32>
    %c0_1 = arith.constant 0 : index
    %c0_2 = arith.constant 0 : index
    %2 = vector.load %arg2[%c0_1, %c0_2] : memref<8x128xf32, #tpu.memory_space<vmem>>, vector<8x128xf32>
    %3 = math.absf %1 : vector<8x128xf32>
    %cst_3 = arith.constant 0.000000e+00 : f32
    %4 = vector.broadcast %cst_3 : f32 to vector<8x128xf32>
    %5 = arith.subf %4, %3 : vector<8x128xf32>
    %6 = math.exp %5 : vector<8x128xf32>
    %cst_4 = arith.constant 1.000000e+00 : f32
    %7 = vector.broadcast %cst_4 : f32 to vector<8x128xf32>
    %8 = arith.addf %7, %6 : vector<8x128xf32>
    %9 = math.log %8 : vector<8x128xf32>
    %cst_5 = arith.constant 1.000000e+00 : f32
    %10 = vector.broadcast %cst_5 : f32 to vector<8x128xf32>
    %11 = arith.addf %10, %6 : vector<8x128xf32>
    %12 = tpu.reciprocal %11 {approx = true} : vector<8x128xf32> -> vector<8x128xf32>
    %cst_6 = arith.constant 0.000000e+00 : f32
    %13 = vector.broadcast %cst_6 : f32 to vector<8x128xf32>
    %14 = arith.cmpf oge, %1, %13 : vector<8x128xf32>
    %15 = arith.mulf %6, %12 : vector<8x128xf32>
    %16 = arith.select %14, %12, %15 : vector<8x128xi1>, vector<8x128xf32>
    %cst_7 = arith.constant 0.000000e+00 : f32
    %17 = vector.broadcast %cst_7 : f32 to vector<8x128xf32>
    %18 = arith.maximumf %1, %17 : vector<8x128xf32>
    %19 = arith.mulf %1, %2 : vector<8x128xf32>
    %20 = arith.subf %18, %19 : vector<8x128xf32>
    %21 = arith.addf %20, %9 : vector<8x128xf32>
    %22 = arith.mulf %16, %2 : vector<8x128xf32>
    %23 = vector.shape_cast %22 : vector<8x128xf32> to vector<1x8x128xf32>
    %cst_8 = arith.constant dense<0.000000e+00> : vector<8x128xf32>
    %24 = vector.multi_reduction <add>, %23, %cst_8 [0] : vector<1x8x128xf32> to vector<8x128xf32>
    %25 = vector.shape_cast %16 : vector<8x128xf32> to vector<1x8x128xf32>
    %cst_9 = arith.constant dense<0.000000e+00> : vector<8x128xf32>
    %26 = vector.multi_reduction <add>, %25, %cst_9 [0] : vector<1x8x128xf32> to vector<8x128xf32>
    %27 = vector.shape_cast %2 : vector<8x128xf32> to vector<1x8x128xf32>
    %cst_10 = arith.constant dense<0.000000e+00> : vector<8x128xf32>
    %28 = vector.multi_reduction <add>, %27, %cst_10 [0] : vector<1x8x128xf32> to vector<8x128xf32>
    %29 = vector.shape_cast %21 : vector<8x128xf32> to vector<1x8x128xf32>
    %cst_11 = arith.constant dense<0.000000e+00> : vector<8x128xf32>
    %30 = vector.multi_reduction <add>, %29, %cst_11 [0] : vector<1x8x128xf32> to vector<8x128xf32>
    %31 = arith.addf %0, %24 : vector<8x128xf32>
    %32 = arith.addf %0, %26 : vector<8x128xf32>
    %33 = arith.addf %0, %28 : vector<8x128xf32>
    %34 = arith.addf %0, %30 : vector<8x128xf32>
    %c0_12 = arith.constant 0 : index
    %c0_13 = arith.constant 0 : index
    %35 = vector.load %arg3[%c0_12, %c0_13] : memref<8x512xf32, #tpu.memory_space<vmem>>, vector<8x128xf32>
    tpu.vector_store %arg3[%c0_12, %c0_13], %31 {strides = array<i32>} : memref<8x512xf32, #tpu.memory_space<vmem>>, vector<8x128xf32>,
    %c0_14 = arith.constant 0 : index
    %c128 = arith.constant 128 : index
    %36 = vector.load %arg3[%c0_14, %c128] : memref<8x512xf32, #tpu.memory_space<vmem>>, vector<8x128xf32>
    tpu.vector_store %arg3[%c0_14, %c128], %32 {strides = array<i32>} : memref<8x512xf32, #tpu.memory_space<vmem>>, vector<8x128xf32>,
    %c0_15 = arith.constant 0 : index
    %c256 = arith.constant 256 : index
    %37 = vector.load %arg3[%c0_15, %c256] : memref<8x512xf32, #tpu.memory_space<vmem>>, vector<8x128xf32>
    tpu.vector_store %arg3[%c0_15, %c256], %33 {strides = array<i32>} : memref<8x512xf32, #tpu.memory_space<vmem>>, vector<8x128xf32>,
    %c0_16 = arith.constant 0 : index
    %c384 = arith.constant 384 : index
    %38 = vector.load %arg3[%c0_16, %c384] : memref<8x512xf32, #tpu.memory_space<vmem>>, vector<8x128xf32>
    tpu.vector_store %arg3[%c0_16, %c384], %34 {strides = array<i32>} : memref<8x512xf32, #tpu.memory_space<vmem>>, vector<8x128xf32>,
    return
  }
  func.func @transform_0(%arg0: i32) -> (i32, i32) {
    %c0_i32 = arith.constant 0 : i32
    %c0_i32_0 = arith.constant 0 : i32
    return %arg0, %c0_i32 : i32, i32
  }
  func.func @transform_1(%arg0: i32) -> (i32, i32) {
    %c0_i32 = arith.constant 0 : i32
    %c0_i32_0 = arith.constant 0 : i32
    return %arg0, %c0_i32 : i32, i32
  }
  func.func @transform_2(%arg0: i32) -> (i32, i32) {
    %c0_i32 = arith.constant 0 : i32
    %c0_i32_0 = arith.constant 0 : i32
    return %arg0, %c0_i32 : i32, i32
  }
}

</mosaic_0001>

<llo_original>
// kernel: tpu_custom_call.1
$region0: #{tpu_custom_call.1}
  #allocation0 [shape = 'u32[]', space=smem, size = 0x4, offset = 0x4, fixed_abs, tag = 'smem constant byte address 0x4 - core index']
  #allocation1 [shape = 'u32[144,128]{1,0:T(1,128)}', space=vmem, size = 0x12000, scoped, tag = 'internal scratch']
  %s0 = inlined_call_operand.hbm [shape: f32[16,128], index: 0, kind: input, shape index: {}]
  %s1 = inlined_call_operand.hbm [shape: f32[16,128], index: 1, kind: input, shape index: {}]
  %s2 = inlined_call_operand.hbm [shape: f32[16,512], index: 2, kind: output, shape index: {}]
  %s3 = sld [smem:[#allocation0]]
  $region49: #{tpu_custom_call.1} parent=0
    _
  %s5 = ssub.s32 1, %s3
  %s6 = scalar_select 0, %s5, %s3
  $region1: #{tpu_custom_call.1} parent=0
    #allocation2 [shape = 'u8[8192]{0}', space=vmem, size = 0x2000, scoped, tag = 'input window, operand 0']
    #allocation3 [shape = 's32[2]{0}', space=sflag, size = 0x8, scoped, tag = 'scoped memory for tpu_custom_call.1']
    #allocation4 [shape = 's32[2]{0}', space=sflag, size = 0x8, scoped, tag = 'scoped memory for tpu_custom_call.1']
    #allocation5 [shape = 'u8[8192]{0}', space=vmem, size = 0x2000, scoped, tag = 'input window, operand 1']
    #allocation6 [shape = 's32[2]{0}', space=sflag, size = 0x8, scoped, tag = 'scoped memory for tpu_custom_call.1']
    #allocation7 [shape = 'u8[32768]{0}', space=vmem, size = 0x8000, scoped, tag = 'output window, operand 0']
    %7 = vsyncpa [#allocation3], 0
    %s8 = scalar_lea.sflag [#allocation3], 1
    %9 = vsyncpa %s8, 0
    %10 = vsyncpa [#allocation6], 0
    %s11 = scalar_lea.sflag [#allocation6], 1
    %12 = vsyncpa %s11, 0
    %13 = vsyncpa [#allocation4], 0
    %s14 = scalar_lea.sflag [#allocation4], 1
    %15 = vsyncpa %s14, 0
    loop: start=0, step=1, limit=4
    $region2: #{tpu_custom_call.1} parent=1 // loop_pre_header
      _
    $region3: #{tpu_custom_call.1} parent=1 // loop_header
      %s17 = sphi 0, %s21
      %p18 = scmp.ge.s32.totalorder %s17, 4
      %s27 = sphi 0, %s29
      %s30 = sphi 0, %s27
      %s31 = sphi 0, %s30
      %s47 = sphi 0, %s31
      %s53 = sphi 0, %s55
      %s56 = sphi 0, %s53
      %s57 = sphi 0, %s56
      %s73 = sphi 0, %s57
      %s79 = sphi 0, %s81
      %s82 = sphi 0, %s79
      %s83 = sphi 0, %s82
      %s99 = sphi 0, %s83
    $region4: #{tpu_custom_call.1} parent=1 // loop_header_branch
      %20 = sbr.rel (%p18) target = $region8
    $region5: #{tpu_custom_call.1} parent=1 // loop_body
      %s22 = ssub.s32 %s17, 1
      %s23 = ssub.s32 %s17, 2
      %s24 = sadd.s32 %s17, 1
      %s25 = ssub.s32 %s17, %s24
      %p26 = scmp.eq.s32.totalorder %s25, 0
      %s28 = sadd.s32 %s27, 1
      %s29 = scalar_select %p26, %s27, %s28
      %p32 = pneg %p26
      %p33 = scmp.eq.s32.totalorder %s17, 1
      %p34 = por %p32, %p33
      %p35 = scmp.ne.s32.totalorder %s27, %s30
      %p36 = scmp.eq.s32.totalorder %s17, 0
      %p37 = por %p35, %p36
      %p38 = scmp.ne.s32.totalorder %s27, %s30
      %p39 = scmp.eq.s32.totalorder %s22, 1
      %p40 = por %p38, %p39
      %p41 = scmp.ne.s32.totalorder %s30, %s31
      %p42 = scmp.eq.s32.totalorder %s22, 0
      %p43 = por %p41, %p42
      %p44 = scmp.ne.s32.totalorder %s30, %s31
      %p45 = scmp.eq.s32.totalorder %s23, 1
      %p46 = por %p44, %p45
      %p48 = scmp.ne.s32.totalorder %s31, %s47
      %p49 = scmp.eq.s32.totalorder %s23, 0
      %p50 = por %p48, %p49
      %s51 = ssub.s32 %s17, %s24
      %p52 = scmp.eq.s32.totalorder %s51, 0
      %s54 = sadd.s32 %s53, 1
      %s55 = scalar_select %p52, %s53, %s54
      %p58 = pneg %p52
      %p59 = scmp.eq.s32.totalorder %s17, 1
      %p60 = por %p58, %p59
      %p61 = scmp.ne.s32.totalorder %s53, %s56
      %p62 = scmp.eq.s32.totalorder %s17, 0
      %p63 = por %p61, %p62
      %p64 = scmp.ne.s32.totalorder %s53, %s56
      %p65 = scmp.eq.s32.totalorder %s22, 1
      %p66 = por %p64, %p65
      %p67 = scmp.ne.s32.totalorder %s56, %s57
      %p68 = scmp.eq.s32.totalorder %s22, 0
      %p69 = por %p67, %p68
      %p70 = scmp.ne.s32.totalorder %s56, %s57
      %p71 = scmp.eq.s32.totalorder %s23, 1
      %p72 = por %p70, %p71
      %p74 = scmp.ne.s32.totalorder %s57, %s73
      %p75 = scmp.eq.s32.totalorder %s23, 0
      %p76 = por %p74, %p75
      %s77 = ssub.s32 %s17, %s24
      %p78 = scmp.eq.s32.totalorder %s77, 0
      %s80 = sadd.s32 %s79, 1
      %s81 = scalar_select %p78, %s79, %s80
      %p84 = pneg %p78
      %p85 = scmp.eq.s32.totalorder %s17, 1
      %p86 = por %p84, %p85
      %p87 = scmp.ne.s32.totalorder %s79, %s82
      %p88 = scmp.eq.s32.totalorder %s17, 0
      %p89 = por %p87, %p88
      %p90 = scmp.ne.s32.totalorder %s79, %s82
      %p91 = scmp.eq.s32.totalorder %s22, 1
      %p92 = por %p90, %p91
      %p93 = scmp.ne.s32.totalorder %s82, %s83
      %p94 = scmp.eq.s32.totalorder %s22, 0
      %p95 = por %p93, %p94
      %p96 = scmp.ne.s32.totalorder %s82, %s83
      %p97 = scmp.eq.s32.totalorder %s23, 1
      %p98 = por %p96, %p97
      %p100 = scmp.ne.s32.totalorder %s83, %s99
      %p101 = scmp.eq.s32.totalorder %s23, 0
      %p102 = por %p100, %p101
      %p103 = scmp.le.s32.totalorder 1, %s17
      %p104 = scmp.lt.s32.totalorder %s17, 3
      %p105 = pnand %p103, %p104
      %p106 = pneg %p105
      // Predicated region
      $region9: #{tpu_custom_call.1} parent=5 // pred_check
        _
      $region10: #{tpu_custom_call.1} parent=5 // pred_check_branch
        %108 = sbr.rel (%p105) target = $region12
      $region11: #{tpu_custom_call.1} parent=5 // pred_region
        %s109 = ssub.s32 %s17, 1
      $region12: #{tpu_custom_call.1} parent=5 // pred_fallthru
        _
      %p110 = scmp.lt.s32.totalorder %s17, 2
      // Predicated region
      $region13: #{tpu_custom_call.1} parent=5 // pred_check
        %p111 = pneg %p110
      $region14: #{tpu_custom_call.1} parent=5 // pred_check_branch
        %113 = sbr.rel (%p111) target = $region16
      $region15: #{tpu_custom_call.1} parent=5 // pred_region
        // Predicated region
        $region17: #{tpu_custom_call.1} parent=15 // pred_check
          %p114 = pneg %p37
        $region18: #{tpu_custom_call.1} parent=15 // pred_check_branch
          %116 = sbr.rel (%p114) target = $region20
        $region19: #{tpu_custom_call.1} parent=15 // pred_region
          %s117 = sand.u32 %s27, 1
          %s118 = scalar_lea.sflag [#allocation3], %s117
          %s119 = sand.u32 %s27, 1
          %s120 = smul.addr %s119, 8
          %s121 = scalar_lea.vmem [#allocation2], %s120
          %s123 = ssub.s32 128, 128
          %124 = vsyncadd %s118, %s123
          %s125 = smul.addr %s17, 128
          %s126 = scalar_lea.hbm %s0, %s125
          %s128 = sshll.u32 %s121, 4
          %s129 = int_to_ptr.vmem [resolvable:$true] %s128
          %131 = dma.hbm_to_vmem [thread:$0]  %s126, 128, %s129, %s118
        $region20: #{tpu_custom_call.1} parent=15 // pred_fallthru
          _
        // Predicated region
        $region21: #{tpu_custom_call.1} parent=15 // pred_check
          %p132 = pneg %p63
        $region22: #{tpu_custom_call.1} parent=15 // pred_check_branch
          %134 = sbr.rel (%p132) target = $region24
        $region23: #{tpu_custom_call.1} parent=15 // pred_region
          %s135 = sand.u32 %s53, 1
          %s136 = scalar_lea.sflag [#allocation6], %s135
          %s137 = sand.u32 %s53, 1
          %s138 = smul.addr %s137, 8
          %s139 = scalar_lea.vmem [#allocation5], %s138
          %s141 = ssub.s32 128, 128
          %142 = vsyncadd %s136, %s141
          %s143 = smul.addr %s17, 128
          %s144 = scalar_lea.hbm %s1, %s143
          %s146 = sshll.u32 %s139, 4
          %s147 = int_to_ptr.vmem [resolvable:$true] %s146
          %149 = dma.hbm_to_vmem [thread:$0]  %s144, 128, %s147, %s136
        $region24: #{tpu_custom_call.1} parent=15 // pred_fallthru
          _
      $region16: #{tpu_custom_call.1} parent=5 // pred_fallthru
        _
      %p150 = scmp.le.s32.totalorder 1, %s17
      %p151 = scmp.lt.s32.totalorder %s17, 3
      %p152 = pnand %p150, %p151
      %p153 = pneg %p152
      // Predicated region
      $region25: #{tpu_custom_call.1} parent=5 // pred_check
        _
      $region26: #{tpu_custom_call.1} parent=5 // pred_check_branch
        %155 = sbr.rel (%p152) target = $region28
      $region27: #{tpu_custom_call.1} parent=5 // pred_region
        %s156 = ssub.s32 %s17, 1
        %s157 = sand.u32 %s30, 1
        %s158 = scalar_lea.sflag [#allocation3], %s157
        %s159 = sand.u32 %s30, 1
        %s160 = smul.addr %s159, 8
        %s161 = scalar_lea.vmem [#allocation2], %s160
        // Predicated region
        $region29: #{tpu_custom_call.1} parent=27 // pred_check
          %p162 = pneg %p43
        $region30: #{tpu_custom_call.1} parent=27 // pred_check_branch
          %164 = sbr.rel (%p162) target = $region32
        $region31: #{tpu_custom_call.1} parent=27 // pred_region
          %165 = dma.done %s158, 128
        $region32: #{tpu_custom_call.1} parent=27 // pred_fallthru
          _
        %s166 = sand.u32 %s56, 1
        %s167 = scalar_lea.sflag [#allocation6], %s166
        %s168 = sand.u32 %s56, 1
        %s169 = smul.addr %s168, 8
        %s170 = scalar_lea.vmem [#allocation5], %s169
        // Predicated region
        $region33: #{tpu_custom_call.1} parent=27 // pred_check
          %p171 = pneg %p69
        $region34: #{tpu_custom_call.1} parent=27 // pred_check_branch
          %173 = sbr.rel (%p171) target = $region36
        $region35: #{tpu_custom_call.1} parent=27 // pred_region
          %174 = dma.done %s167, 128
        $region36: #{tpu_custom_call.1} parent=27 // pred_fallthru
          _
        %s175 = sand.u32 %s30, 1
        %s176 = scalar_lea.sflag [#allocation3], %s175
        %s177 = sand.u32 %s30, 1
        %s178 = smul.addr %s177, 8
        %s179 = scalar_lea.vmem [#allocation2], %s178
        %p180 = pneg %p43
        %p181 = pneg %p40
        %s182 = sand.u32 %s56, 1
        %s183 = scalar_lea.sflag [#allocation6], %s182
        %s184 = sand.u32 %s56, 1
        %s185 = smul.addr %s184, 8
        %s186 = scalar_lea.vmem [#allocation5], %s185
        %p187 = pneg %p69
        %p188 = pneg %p66
        %p189 = pneg %p95
        %p190 = pneg %p92
        %s191 = sand.u32 %s82, 1
        %s192 = scalar_lea.sflag [#allocation4], %s191
        %s193 = sand.u32 %s82, 1
        %s194 = smul.addr %s193, 32
        %s195 = scalar_lea.vmem [#allocation7], %s194
        %v196 = vld [vmem:[%s161] sm:$0xff]
        %v197 = vld [vmem:[%s170] sm:$0xff]
        %v198 = vand.u32 2147483647, %v196
        %v199 = vsub.f32 0.0, %v198
        %v200 = vmul.f32 %v199, 1.442695
        %v201 = vpow.pop %v200
        %v202 = vadd.f32 %v201, 1.0
        %v203 = vlog2.pop %v202
        %v204 = vmul.f32 %v203, 0.6931472
        %v205 = vrcp.pop %v202
        %vm206 = vcmp.ge.f32.partialorder %v196, 0.0
        %v207 = vmul.f32 %v201, %v205
        %v208 = vsel %vm206, %v205, %v207
        %v209 = vmax.f32 %v196, 0.0
        %v210 = vmul.f32 %v196, %v197
        %v211 = vsub.f32 %v209, %v210
        %v212 = vadd.f32 %v211, %v204
        %v213 = vmul.f32 %v208, %v197
        %v214 = vadd.f32 %v213, 0.0
        %v215 = vadd.f32 %v208, 0.0
        %v216 = vadd.f32 %v197, 0.0
        %v217 = vadd.f32 %v212, 0.0
        %v218 = vadd.f32 %v214, 0.0
        %v219 = vadd.f32 %v215, 0.0
        %v220 = vadd.f32 %v216, 0.0
        %v221 = vadd.f32 %v217, 0.0
        %222 = vst [vmem:[%s195] sm:$0xff] %v218
        %223 = vst [vmem:[%s195 + $0x8] sm:$0xff] %v219
        %224 = vst [vmem:[%s195 + $0x10] sm:$0xff] %v220
        %225 = vst [vmem:[%s195 + $0x18] sm:$0xff] %v221
        %s226 = sand.u32 %s82, 1
        %s227 = scalar_lea.sflag [#allocation4], %s226
        %s228 = sand.u32 %s82, 1
        %s229 = smul.addr %s228, 32
        %s230 = scalar_lea.vmem [#allocation7], %s229
        // Predicated region
        $region37: #{tpu_custom_call.1} parent=27 // pred_check
          %p231 = pneg %p92
        $region38: #{tpu_custom_call.1} parent=27 // pred_check_branch
          %233 = sbr.rel (%p231) target = $region40
        $region39: #{tpu_custom_call.1} parent=27 // pred_region
          %s235 = ssub.s32 512, 512
          %236 = vsyncadd %s227, %s235
          %s237 = smul.addr %s22, 4
          %s238 = smul.addr %s237, 128
          %s239 = scalar_lea.hbm %s2, %s238
          %s241 = sshll.u32 %s230, 4
          %s242 = int_to_ptr.vmem [resolvable:$true] %s241
          %244 = dma.vmem_to_hbm [thread:$0]  %s242, 512, %s239, %s227
        $region40: #{tpu_custom_call.1} parent=27 // pred_fallthru
          _
      $region28: #{tpu_custom_call.1} parent=5 // pred_fallthru
        _
      %p245 = scmp.le.s32.totalorder 2, %s17
      // Predicated region
      $region41: #{tpu_custom_call.1} parent=5 // pred_check
        %p246 = pneg %p245
      $region42: #{tpu_custom_call.1} parent=5 // pred_check_branch
        %248 = sbr.rel (%p246) target = $region44
      $region43: #{tpu_custom_call.1} parent=5 // pred_region
        %s249 = ssub.s32 %s17, 2
        // Predicated region
        $region45: #{tpu_custom_call.1} parent=43 // pred_check
          %p250 = pneg %p98
        $region46: #{tpu_custom_call.1} parent=43 // pred_check_branch
          %252 = sbr.rel (%p250) target = $region48
        $region47: #{tpu_custom_call.1} parent=43 // pred_region
          %s253 = sand.u32 %s83, 1
          %s254 = scalar_lea.sflag [#allocation4], %s253
          %s255 = sand.u32 %s83, 1
          %s256 = smul.addr %s255, 32
          %s257 = scalar_lea.vmem [#allocation7], %s256
          %258 = dma.done %s254, 512
        $region48: #{tpu_custom_call.1} parent=43 // pred_fallthru
          _
      $region44: #{tpu_custom_call.1} parent=5 // pred_fallthru
        _
    $region6: #{tpu_custom_call.1} parent=1 // loop_footer
      %s21 = sadd.s32 1, %s17
    $region7: #{tpu_custom_call.1} parent=1 // loop_footer_branch
      %16 = sbr.rel target = $region3
    $region8: #{tpu_custom_call.1} parent=1 // loop_exit
      _
    %259 = vsyncpa [#allocation3], 1
    %s260 = scalar_lea.sflag [#allocation3], 1
    %261 = vsyncpa %s260, 1
    %262 = vsyncpa [#allocation6], 1
    %s263 = scalar_lea.sflag [#allocation6], 1
    %264 = vsyncpa %s263, 1
    %265 = vsyncpa [#allocation4], 1
    %s266 = scalar_lea.sflag [#allocation4], 1
    %267 = vsyncpa %s266, 1

</llo_original>
